<compile_context>
chip_gen: v5e
topology: v5e:2x2
jax: 0.10.0
libtpu: 0.0.40
codegen_flags: <defaults>
</compile_context>

<pallas_src>
import jax
import jax.numpy as jnp
from jax.experimental import pallas as pl
from jax.experimental.pallas import tpu as pltpu


def _make_se_kernel(hw_true):
    """Build the SE kernel; hw_true is the spatial size (for the mean)."""
    inv_hw = 1.0 / float(hw_true)

    def kernel(x_ref, w1t_ref, b1_ref, w2t_ref, b2_ref, o_ref):
        # x_ref: (B, C, HW)  -- B batch elements per grid step.

        # --- squeeze: global average pool over the spatial (lane) axis -> (B, C) ---
        # Sum with f32 accumulation, scale by 1/HW; no f32 copy of the whole tile.
        pooled = jnp.sum(x_ref[...], axis=-1, dtype=jnp.float32) * inv_hw

        # --- excitation: 1x1 conv == dense.  C -> R, ReLU, R -> C, sigmoid ---
        h = jnp.dot(pooled, w1t_ref[...], preferred_element_type=jnp.float32)
        h = jnp.maximum(h + b1_ref[...], 0.0)                       # ReLU, (B, R)
        s = jnp.dot(h, w2t_ref[...], preferred_element_type=jnp.float32)
        s = jax.nn.sigmoid(s + b2_ref[...])                         # (B, C) f32

        # --- scale: re-read the ref; multiply in the I/O dtype (bf16-friendly) ---
        gate = s.astype(o_ref.dtype)[:, :, None]
        o_ref[...] = x_ref[...] * gate

    return kernel


def _vmem_plan():
    """Per-generation VMEM sizing: (block_budget_bytes, vmem_limit_bytes, megacore)."""
    try:
        cap = pltpu.get_tpu_info().vmem_capacity_bytes
    except Exception:
        cap = 64 * 1024 * 1024  # conservative (v7x-sized) fallback
    if cap >= 96 * 1024 * 1024:
        # v5e / v6e: 128 MiB VMEM, single TensorCore per chip.
        return 64 * 1024 * 1024, 96 * 1024 * 1024, False
    # v7x (or unknown): 64 MiB VMEM per TC, two TensorCores (megacore) per chip.
    return 24 * 1024 * 1024, 48 * 1024 * 1024, True


def squeeze_and_excitation(x, w1, b1, w2, b2):
    """x: (N, C, H, W).  w1: (R, C), b1: (R,), w2: (C, R), b2: (C,)."""
    N, C, H, W = x.shape
    R = w1.shape[0]
    HW = H * W

    # No pad / slice: pass the unpadded (N, C, HW) view; block last dim == HW.
    x_flat = x.reshape(N, C, HW)

    block_budget, vmem_limit, megacore = _vmem_plan()

    # VMEM footprint per batch element uses the padded vreg layout, not raw bytes:
    # lanes round HW up to 128; sublanes round C up to 8 (32-bit) / 16 (bf16) / 32 (i8).
    itemsize = jnp.dtype(x.dtype).itemsize
    sublane_mult = 8 * max(1, 4 // itemsize)
    c_pad = pl.cdiv(C, sublane_mult) * sublane_mult
    hw_pad = pl.cdiv(HW, 128) * 128
    per_batch_bytes = c_pad * hw_pad * itemsize

    # ~4 block copies resident (double-buffered input + double-buffered output).
    B = max(1, int(block_budget // (4 * per_batch_bytes)))
    B = min(B, N)
    if megacore and N >= 2:
        # Keep at least 2 grid steps so both v7x TensorCores get work.
        B = min(B, pl.cdiv(N, 2))
    grid = pl.cdiv(N, B)

    # Pre-transpose weights (glue) so the kernel does (B,C)@(C,R) and (B,R)@(R,C).
    w1_t = w1.T.astype(jnp.float32)           # (C, R)
    w2_t = w2.T.astype(jnp.float32)           # (R, C)
    b1_2d = b1.reshape(1, R).astype(jnp.float32)
    b2_2d = b2.reshape(1, C).astype(jnp.float32)

    out = pl.pallas_call(
        _make_se_kernel(HW),
        out_shape=jax.ShapeDtypeStruct((N, C, HW), x.dtype),
        grid_spec=pltpu.PrefetchScalarGridSpec(
            num_scalar_prefetch=0,
            grid=(grid,),
            in_specs=[
                pl.BlockSpec((B, C, HW), lambda n: (n, 0, 0)),   # x (B batch elements)
                pl.BlockSpec((C, R), lambda n: (0, 0)),          # w1^T (constant)
                pl.BlockSpec((1, R), lambda n: (0, 0)),          # b1   (constant)
                pl.BlockSpec((R, C), lambda n: (0, 0)),          # w2^T (constant)
                pl.BlockSpec((1, C), lambda n: (0, 0)),          # b2   (constant)
            ],
            out_specs=pl.BlockSpec((B, C, HW), lambda n: (n, 0, 0)),
        ),
        compiler_params=pltpu.CompilerParams(
            dimension_semantics=("parallel",),
            vmem_limit_bytes=vmem_limit,
        ),
    )(x_flat, w1_t, b1_2d, w2_t, b2_2d)

    return out.reshape(N, C, H, W)


def _reference(x, w1, b1, w2, b2):
    # Pure-JAX reference mirroring the PyTorch forward.
    pooled = jnp.mean(x, axis=(2, 3))                               # (N, C)
    h = jnp.maximum(pooled @ w1.T + b1, 0.0)                        # (N, R)
    s = jax.nn.sigmoid(h @ w2.T + b2)                               # (N, C)
    return x * s[:, :, None, None]


if __name__ == "__main__":
    # Small shapes consistent with the module: channel=64, reduction=32, 16x16 spatial.
    N, C, H, W = 2, 64, 16, 16
    R = 32

    key = jax.random.PRNGKey(0)
    kx, k1, k2, k3, k4 = jax.random.split(key, 5)

    x = jax.random.normal(kx, (N, C, H, W), dtype=jnp.float32)
    # Deterministic synthetic parameters (Conv2d(C,R,1) -> weight (R,C,1,1) squeezed).
    w1 = 0.1 * jax.random.normal(k1, (R, C), dtype=jnp.float32)
    b1 = 0.1 * jax.random.normal(k2, (R,), dtype=jnp.float32)
    w2 = 0.1 * jax.random.normal(k3, (C, R), dtype=jnp.float32)
    b2 = 0.1 * jax.random.normal(k4, (C,), dtype=jnp.float32)

    y = squeeze_and_excitation(x, w1, b1, w2, b2)
    y = jax.block_until_ready(y)

    y_ref = _reference(x, w1, b1, w2, b2)
    assert y.shape == (N, C, H, W)
    assert jnp.allclose(y, y_ref, atol=1e-5, rtol=1e-5), "mismatch vs reference"

    print("KERNEL_OK")
</pallas_src>

<mosaic_0001>
module attributes {stable_mosaic.version = 11 : i64} {
  func.func @kernel(%arg0: i32, %arg1: memref<1x64x256xf32, #tpu.memory_space<vmem>>, %arg2: memref<64x32xf32, #tpu.memory_space<vmem>>, %arg3: memref<1x32xf32, #tpu.memory_space<vmem>>, %arg4: memref<32x64xf32, #tpu.memory_space<vmem>>, %arg5: memref<1x64xf32, #tpu.memory_space<vmem>>, %arg6: memref<1x64x256xf32, #tpu.memory_space<vmem>>) attributes {dimension_semantics = [#tpu.dimension_semantics<parallel>], iteration_bounds = array<i64: 2>, scalar_prefetch = 0 : i64, scratch_operands = 0 : i64, tpu.core_type = #tpu.core_type<tc>, window_params = [{transform_indices = @transform_0, window_bounds = array<i64: 1, 64, 256>}, {pipeline_mode = #tpu.pipeline_mode<synchronous>, transform_indices = @transform_1, window_bounds = array<i64: 64, 32>}, {pipeline_mode = #tpu.pipeline_mode<synchronous>, transform_indices = @transform_2, window_bounds = array<i64: 1, 32>}, {pipeline_mode = #tpu.pipeline_mode<synchronous>, transform_indices = @transform_3, window_bounds = array<i64: 32, 64>}, {pipeline_mode = #tpu.pipeline_mode<synchronous>, transform_indices = @transform_4, window_bounds = array<i64: 1, 64>}, {transform_indices = @transform_5, window_bounds = array<i64: 1, 64, 256>}]} {
    %c0 = arith.constant 0 : index
    %c0_0 = arith.constant 0 : index
    %c0_1 = arith.constant 0 : index
    %0 = vector.load %arg1[%c0, %c0_0, %c0_1] : memref<1x64x256xf32, #tpu.memory_space<vmem>>, vector<1x64x256xf32>
    %cst = arith.constant dense<0.000000e+00> : vector<1x64xf32>
    %1 = vector.multi_reduction <add>, %0, %cst [2] : vector<1x64x256xf32> to vector<1x64xf32>
    %cst_2 = arith.constant 3.906250e-03 : f32
    %2 = vector.broadcast %cst_2 : f32 to vector<1x64xf32>
    %3 = arith.mulf %1, %2 : vector<1x64xf32>
    %c0_3 = arith.constant 0 : index
    %c0_4 = arith.constant 0 : index
    %4 = vector.load %arg2[%c0_3, %c0_4] : memref<64x32xf32, #tpu.memory_space<vmem>>, vector<64x32xf32>
    %cst_5 = arith.constant dense<0.000000e+00> : vector<1x32xf32>
    %5 = tpu.matmul %3, %4, %cst_5 {dimension_numbers = #tpu.dot_dimension_numbers<[1], [0], [0], [1], [0, 0, 1, 1], [], []>} : vector<1x64xf32>, vector<64x32xf32>, vector<1x32xf32> -> vector<1x32xf32>
    %c0_6 = arith.constant 0 : index
    %c0_7 = arith.constant 0 : index
    %6 = vector.load %arg3[%c0_6, %c0_7] : memref<1x32xf32, #tpu.memory_space<vmem>>, vector<1x32xf32>
    %7 = arith.addf %5, %6 : vector<1x32xf32>
    %cst_8 = arith.constant 0.000000e+00 : f32
    %8 = vector.broadcast %cst_8 : f32 to vector<1x32xf32>
    %9 = arith.maximumf %7, %8 : vector<1x32xf32>
    %c0_9 = arith.constant 0 : index
    %c0_10 = arith.constant 0 : index
    %10 = vector.load %arg4[%c0_9, %c0_10] : memref<32x64xf32, #tpu.memory_space<vmem>>, vector<32x64xf32>
    %cst_11 = arith.constant dense<0.000000e+00> : vector<1x64xf32>
    %11 = tpu.matmul %9, %10, %cst_11 {dimension_numbers = #tpu.dot_dimension_numbers<[1], [0], [0], [1], [0, 0, 1, 1], [], []>} : vector<1x32xf32>, vector<32x64xf32>, vector<1x64xf32> -> vector<1x64xf32>
    %c0_12 = arith.constant 0 : index
    %c0_13 = arith.constant 0 : index
    %12 = vector.load %arg5[%c0_12, %c0_13] : memref<1x64xf32, #tpu.memory_space<vmem>>, vector<1x64xf32>
    %13 = arith.addf %11, %12 : vector<1x64xf32>
    %14 = arith.negf %13 : vector<1x64xf32>
    %15 = math.exp %14 : vector<1x64xf32>
    %cst_14 = arith.constant 1.000000e+00 : f32
    %16 = vector.broadcast %cst_14 : f32 to vector<1x64xf32>
    %17 = arith.addf %16, %15 : vector<1x64xf32>
    %18 = arith.divf %16, %17 : vector<1x64xf32>
    %19 = vector.shape_cast %18 : vector<1x64xf32> to vector<1x64x1xf32>
    %c0_15 = arith.constant 0 : index
    %c0_16 = arith.constant 0 : index
    %c0_17 = arith.constant 0 : index
    %20 = vector.load %arg1[%c0_15, %c0_16, %c0_17] : memref<1x64x256xf32, #tpu.memory_space<vmem>>, vector<1x64x256xf32>
    %21 = vector.broadcast %19 : vector<1x64x1xf32> to vector<1x64x256xf32>
    %22 = arith.mulf %20, %21 : vector<1x64x256xf32>
    %c0_18 = arith.constant 0 : index
    %c0_19 = arith.constant 0 : index
    %c0_20 = arith.constant 0 : index
    %23 = vector.load %arg6[%c0_18, %c0_19, %c0_20] : memref<1x64x256xf32, #tpu.memory_space<vmem>>, vector<1x64x256xf32>
    tpu.vector_store %arg6[%c0_18, %c0_19, %c0_20], %22 {strides = array<i32>} : memref<1x64x256xf32, #tpu.memory_space<vmem>>, vector<1x64x256xf32>,
    return
  }
  func.func @transform_0(%arg0: i32) -> (i32, i32, i32) {
    %c0_i32 = arith.constant 0 : i32
    %c0_i32_0 = arith.constant 0 : i32
    %c0_i32_1 = arith.constant 0 : i32
    return %arg0, %c0_i32, %c0_i32_0 : i32, i32, i32
  }
  func.func @transform_1(%arg0: i32) -> (i32, i32) {
    %c0_i32 = arith.constant 0 : i32
    %c0_i32_0 = arith.constant 0 : i32
    %c0_i32_1 = arith.constant 0 : i32
    return %c0_i32, %c0_i32_0 : i32, i32
  }
  func.func @transform_2(%arg0: i32) -> (i32, i32) {
    %c0_i32 = arith.constant 0 : i32
    %c0_i32_0 = arith.constant 0 : i32
    %c0_i32_1 = arith.constant 0 : i32
    return %c0_i32, %c0_i32_0 : i32, i32
  }
  func.func @transform_3(%arg0: i32) -> (i32, i32) {
    %c0_i32 = arith.constant 0 : i32
    %c0_i32_0 = arith.constant 0 : i32
    %c0_i32_1 = arith.constant 0 : i32
    return %c0_i32, %c0_i32_0 : i32, i32
  }
  func.func @transform_4(%arg0: i32) -> (i32, i32) {
    %c0_i32 = arith.constant 0 : i32
    %c0_i32_0 = arith.constant 0 : i32
    %c0_i32_1 = arith.constant 0 : i32
    return %c0_i32, %c0_i32_0 : i32, i32
  }
  func.func @transform_5(%arg0: i32) -> (i32, i32, i32) {
    %c0_i32 = arith.constant 0 : i32
    %c0_i32_0 = arith.constant 0 : i32
    %c0_i32_1 = arith.constant 0 : i32
    return %arg0, %c0_i32, %c0_i32_0 : i32, i32, i32
  }
}

</mosaic_0001>

<llo_original>
// kernel: tpu_custom_call.1
$region0: #{tpu_custom_call.1}
  #allocation0 [shape = 'u32[]', space=smem, size = 0x4, offset = 0x4, fixed_abs, tag = 'smem constant byte address 0x4 - core index']
  #allocation1 [shape = 'u32[72,128]{1,0:T(1,128)}', space=vmem, size = 0x9000, scoped, tag = 'internal scratch']
  %s0 = inlined_call_operand.hbm [shape: f32[2,64,256], index: 0, kind: input, shape index: {}]
  %s1 = inlined_call_operand.vmem [shape: f32[64,32], index: 1, kind: input, shape index: {}]
  %s2 = inlined_call_operand.vmem [shape: f32[1,32], index: 2, kind: input, shape index: {}]
  %s3 = inlined_call_operand.vmem [shape: f32[32,64], index: 3, kind: input, shape index: {}]
  %s4 = inlined_call_operand.vmem [shape: f32[1,64], index: 4, kind: input, shape index: {}]
  %s5 = inlined_call_operand.hbm [shape: f32[2,64,256], index: 5, kind: output, shape index: {}]
  %s6 = sld [smem:[#allocation0]]
  $region57: #{tpu_custom_call.1} parent=0
    _
  %s8 = ssub.s32 1, %s6
  %s9 = scalar_select 0, %s8, %s6
  $region1: #{tpu_custom_call.1} parent=0
    #allocation2 [shape = 'u8[131072]{0}', space=vmem, size = 0x20000, scoped, tag = 'input window, operand 0']
    #allocation3 [shape = 's32[2]{0}', space=sflag, size = 0x8, scoped, tag = 'scoped memory for tpu_custom_call.1']
    #allocation4 [shape = 's32[2]{0}', space=sflag, size = 0x8, scoped, tag = 'scoped memory for tpu_custom_call.1']
    #allocation5 [shape = 'u8[131072]{0}', space=vmem, size = 0x20000, scoped, tag = 'output window, operand 0']
    %10 = vsyncpa [#allocation3], 0
    %s11 = scalar_lea.sflag [#allocation3], 1
    %12 = vsyncpa %s11, 0
    %13 = vsyncpa [#allocation4], 0
    %s14 = scalar_lea.sflag [#allocation4], 1
    %15 = vsyncpa %s14, 0
    loop: start=0, step=1, limit=4
    $region2: #{tpu_custom_call.1} parent=1 // loop_pre_header
      _
    $region3: #{tpu_custom_call.1} parent=1 // loop_header
      %s17 = sphi 0, %s21
      %p18 = scmp.ge.s32.totalorder %s17, 4
      %s27 = sphi 0, %s29
      %s30 = sphi 0, %s27
      %s31 = sphi 0, %s30
      %s47 = sphi 0, %s31
      %s51 = sphi 0, %s51
      %s53 = sphi 0, %s51
      %s54 = sphi 0, %s53
      %s68 = sphi 0, %s54
      %s72 = sphi 0, %s72
      %s74 = sphi 0, %s72
      %s75 = sphi 0, %s74
      %s89 = sphi 0, %s75
      %s93 = sphi 0, %s93
      %s95 = sphi 0, %s93
      %s96 = sphi 0, %s95
      %s110 = sphi 0, %s96
      %s114 = sphi 0, %s114
      %s116 = sphi 0, %s114
      %s117 = sphi 0, %s116
      %s131 = sphi 0, %s117
      %s137 = sphi 0, %s139
      %s140 = sphi 0, %s137
      %s141 = sphi 0, %s140
      %s157 = sphi 0, %s141
    $region4: #{tpu_custom_call.1} parent=1 // loop_header_branch
      %20 = sbr.rel (%p18) target = $region8
    $region5: #{tpu_custom_call.1} parent=1 // loop_body
      %s22 = ssub.s32 %s17, 1
      %s23 = ssub.s32 %s17, 2
      %s24 = sadd.s32 %s17, 1
      %s25 = ssub.s32 %s17, %s24
      %p26 = scmp.eq.s32.totalorder %s25, 0
      %s28 = sadd.s32 %s27, 1
      %s29 = scalar_select %p26, %s27, %s28
      %p32 = pneg %p26
      %p33 = scmp.eq.s32.totalorder %s17, 1
      %p34 = por %p32, %p33
      %p35 = scmp.ne.s32.totalorder %s27, %s30
      %p36 = scmp.eq.s32.totalorder %s17, 0
      %p37 = por %p35, %p36
      %p38 = scmp.ne.s32.totalorder %s27, %s30
      %p39 = scmp.eq.s32.totalorder %s22, 1
      %p40 = por %p38, %p39
      %p41 = scmp.ne.s32.totalorder %s30, %s31
      %p42 = scmp.eq.s32.totalorder %s22, 0
      %p43 = por %p41, %p42
      %p44 = scmp.ne.s32.totalorder %s30, %s31
      %p45 = scmp.eq.s32.totalorder %s23, 1
      %p46 = por %p44, %p45
      %p48 = scmp.ne.s32.totalorder %s31, %s47
      %p49 = scmp.eq.s32.totalorder %s23, 0
      %p50 = por %p48, %p49
      %s52 = sadd.s32 %s51, 1
      %p55 = scmp.eq.s32.totalorder %s17, 1
      %p56 = scmp.ne.s32.totalorder %s51, %s53
      %p57 = scmp.eq.s32.totalorder %s17, 0
      %p58 = por %p56, %p57
      %p59 = scmp.ne.s32.totalorder %s51, %s53
      %p60 = scmp.eq.s32.totalorder %s22, 1
      %p61 = por %p59, %p60
      %p62 = scmp.ne.s32.totalorder %s53, %s54
      %p63 = scmp.eq.s32.totalorder %s22, 0
      %p64 = por %p62, %p63
      %p65 = scmp.ne.s32.totalorder %s53, %s54
      %p66 = scmp.eq.s32.totalorder %s23, 1
      %p67 = por %p65, %p66
      %p69 = scmp.ne.s32.totalorder %s54, %s68
      %p70 = scmp.eq.s32.totalorder %s23, 0
      %p71 = por %p69, %p70
      %s73 = sadd.s32 %s72, 1
      %p76 = scmp.eq.s32.totalorder %s17, 1
      %p77 = scmp.ne.s32.totalorder %s72, %s74
      %p78 = scmp.eq.s32.totalorder %s17, 0
      %p79 = por %p77, %p78
      %p80 = scmp.ne.s32.totalorder %s72, %s74
      %p81 = scmp.eq.s32.totalorder %s22, 1
      %p82 = por %p80, %p81
      %p83 = scmp.ne.s32.totalorder %s74, %s75
      %p84 = scmp.eq.s32.totalorder %s22, 0
      %p85 = por %p83, %p84
      %p86 = scmp.ne.s32.totalorder %s74, %s75
      %p87 = scmp.eq.s32.totalorder %s23, 1
      %p88 = por %p86, %p87
      %p90 = scmp.ne.s32.totalorder %s75, %s89
      %p91 = scmp.eq.s32.totalorder %s23, 0
      %p92 = por %p90, %p91
      %s94 = sadd.s32 %s93, 1
      %p97 = scmp.eq.s32.totalorder %s17, 1
      %p98 = scmp.ne.s32.totalorder %s93, %s95
      %p99 = scmp.eq.s32.totalorder %s17, 0
      %p100 = por %p98, %p99
      %p101 = scmp.ne.s32.totalorder %s93, %s95
      %p102 = scmp.eq.s32.totalorder %s22, 1
      %p103 = por %p101, %p102
      %p104 = scmp.ne.s32.totalorder %s95, %s96
      %p105 = scmp.eq.s32.totalorder %s22, 0
      %p106 = por %p104, %p105
      %p107 = scmp.ne.s32.totalorder %s95, %s96
      %p108 = scmp.eq.s32.totalorder %s23, 1
      %p109 = por %p107, %p108
      %p111 = scmp.ne.s32.totalorder %s96, %s110
      %p112 = scmp.eq.s32.totalorder %s23, 0
      %p113 = por %p111, %p112
      %s115 = sadd.s32 %s114, 1
      %p118 = scmp.eq.s32.totalorder %s17, 1
      %p119 = scmp.ne.s32.totalorder %s114, %s116
      %p120 = scmp.eq.s32.totalorder %s17, 0
      %p121 = por %p119, %p120
      %p122 = scmp.ne.s32.totalorder %s114, %s116
      %p123 = scmp.eq.s32.totalorder %s22, 1
      %p124 = por %p122, %p123
      %p125 = scmp.ne.s32.totalorder %s116, %s117
      %p126 = scmp.eq.s32.totalorder %s22, 0
      %p127 = por %p125, %p126
      %p128 = scmp.ne.s32.totalorder %s116, %s117
      %p129 = scmp.eq.s32.totalorder %s23, 1
      %p130 = por %p128, %p129
      %p132 = scmp.ne.s32.totalorder %s117, %s131
      %p133 = scmp.eq.s32.totalorder %s23, 0
      %p134 = por %p132, %p133
      %s135 = ssub.s32 %s17, %s24
      %p136 = scmp.eq.s32.totalorder %s135, 0
      %s138 = sadd.s32 %s137, 1
      %s139 = scalar_select %p136, %s137, %s138
      %p142 = pneg %p136
      %p143 = scmp.eq.s32.totalorder %s17, 1
      %p144 = por %p142, %p143
      %p145 = scmp.ne.s32.totalorder %s137, %s140
      %p146 = scmp.eq.s32.totalorder %s17, 0
      %p147 = por %p145, %p146
      %p148 = scmp.ne.s32.totalorder %s137, %s140
      %p149 = scmp.eq.s32.totalorder %s22, 1
      %p150 = por %p148, %p149
      %p151 = scmp.ne.s32.totalorder %s140, %s141
      %p152 = scmp.eq.s32.totalorder %s22, 0
      %p153 = por %p151, %p152
      %p154 = scmp.ne.s32.totalorder %s140, %s141
      %p155 = scmp.eq.s32.totalorder %s23, 1
      %p156 = por %p154, %p155
      %p158 = scmp.ne.s32.totalorder %s141, %s157
      %p159 = scmp.eq.s32.totalorder %s23, 0
      %p160 = por %p158, %p159
      %p161 = scmp.le.s32.totalorder 1, %s17
      %p162 = scmp.lt.s32.totalorder %s17, 3
      %p163 = pnand %p161, %p162
      %p164 = pneg %p163
      // Predicated region
      $region9: #{tpu_custom_call.1} parent=5 // pred_check
        _
      $region10: #{tpu_custom_call.1} parent=5 // pred_check_branch
        %166 = sbr.rel (%p163) target = $region12
      $region11: #{tpu_custom_call.1} parent=5 // pred_region
        %s167 = ssub.s32 %s17, 1
        // Predicated region
        $region13: #{tpu_custom_call.1} parent=11 // pred_check
          %p168 = pneg %p64
        $region14: #{tpu_custom_call.1} parent=11 // pred_check_branch
          %170 = sbr.rel (%p168) target = $region16
        $region15: #{tpu_custom_call.1} parent=11 // pred_region
          _
        $region16: #{tpu_custom_call.1} parent=11 // pred_fallthru
          _
        // Predicated region
        $region17: #{tpu_custom_call.1} parent=11 // pred_check
          %p171 = pneg %p85
        $region18: #{tpu_custom_call.1} parent=11 // pred_check_branch
          %173 = sbr.rel (%p171) target = $region20
        $region19: #{tpu_custom_call.1} parent=11 // pred_region
          _
        $region20: #{tpu_custom_call.1} parent=11 // pred_fallthru
          _
        // Predicated region
        $region21: #{tpu_custom_call.1} parent=11 // pred_check
          %p174 = pneg %p106
        $region22: #{tpu_custom_call.1} parent=11 // pred_check_branch
          %176 = sbr.rel (%p174) target = $region24
        $region23: #{tpu_custom_call.1} parent=11 // pred_region
          _
        $region24: #{tpu_custom_call.1} parent=11 // pred_fallthru
          _
        // Predicated region
        $region25: #{tpu_custom_call.1} parent=11 // pred_check
          %p177 = pneg %p127
        $region26: #{tpu_custom_call.1} parent=11 // pred_check_branch
          %179 = sbr.rel (%p177) target = $region28
        $region27: #{tpu_custom_call.1} parent=11 // pred_region
          _
        $region28: #{tpu_custom_call.1} parent=11 // pred_fallthru
          _
      $region12: #{tpu_custom_call.1} parent=5 // pred_fallthru
        _
      %p180 = scmp.lt.s32.totalorder %s17, 2
      // Predicated region
      $region29: #{tpu_custom_call.1} parent=5 // pred_check
        %p181 = pneg %p180
      $region30: #{tpu_custom_call.1} parent=5 // pred_check_branch
        %183 = sbr.rel (%p181) target = $region32
      $region31: #{tpu_custom_call.1} parent=5 // pred_region
        // Predicated region
        $region33: #{tpu_custom_call.1} parent=31 // pred_check
          %p184 = pneg %p37
        $region34: #{tpu_custom_call.1} parent=31 // pred_check_branch
          %186 = sbr.rel (%p184) target = $region36
        $region35: #{tpu_custom_call.1} parent=31 // pred_region
          %s187 = sand.u32 %s27, 1
          %s188 = scalar_lea.sflag [#allocation3], %s187
          %s189 = sand.u32 %s27, 1
          %s190 = smul.addr %s189, 128
          %s191 = scalar_lea.vmem [#allocation2], %s190
          %193 = vsyncadd %s188, 0
          %s194 = smul.addr %s17, 16
          %s195 = smul.addr %s194, 8
          %s196 = scalar_lea.hbm %s0, %s195
          %s197 = sshll.u32 %s196, 4
          %s198 = int_to_ptr.hbm [resolvable:$true] %s197
          %s199 = sshll.u32 %s191, 4
          %s200 = int_to_ptr.vmem [resolvable:$true] %s199
          %205 = dma.hbm_to_vmem [thread:$0]  %s198, 2048, %s200, %s188, 256, 256, 16
        $region36: #{tpu_custom_call.1} parent=31 // pred_fallthru
          _
      $region32: #{tpu_custom_call.1} parent=5 // pred_fallthru
        _
      %p206 = scmp.le.s32.totalorder 1, %s17
      %p207 = scmp.lt.s32.totalorder %s17, 3
      %p208 = pnand %p206, %p207
      %p209 = pneg %p208
      // Predicated region
      $region37: #{tpu_custom_call.1} parent=5 // pred_check
        _
      $region38: #{tpu_custom_call.1} parent=5 // pred_check_branch
        %211 = sbr.rel (%p208) target = $region40
      $region39: #{tpu_custom_call.1} parent=5 // pred_region
        %s212 = ssub.s32 %s17, 1
        %s213 = sand.u32 %s30, 1
        %s214 = scalar_lea.sflag [#allocation3], %s213
        %s215 = sand.u32 %s30, 1
        %s216 = smul.addr %s215, 128
        %s217 = scalar_lea.vmem [#allocation2], %s216
        // Predicated region
        $region41: #{tpu_custom_call.1} parent=39 // pred_check
          %p218 = pneg %p43
        $region42: #{tpu_custom_call.1} parent=39 // pred_check_branch
          %220 = sbr.rel (%p218) target = $region44
        $region43: #{tpu_custom_call.1} parent=39 // pred_region
          %222 = dma.done %s214, 2048
        $region44: #{tpu_custom_call.1} parent=39 // pred_fallthru
          _
        %s223 = sand.u32 %s30, 1
        %s224 = scalar_lea.sflag [#allocation3], %s223
        %s225 = sand.u32 %s30, 1
        %s226 = smul.addr %s225, 128
        %s227 = scalar_lea.vmem [#allocation2], %s226
        %p228 = pneg %p43
        %p229 = pneg %p40
        %p230 = pneg %p64
        %p231 = pneg %p61
        %p232 = pneg %p85
        %p233 = pneg %p82
        %p234 = pneg %p106
        %p235 = pneg %p103
        %p236 = pneg %p127
        %p237 = pneg %p124
        %p238 = pneg %p153
        %p239 = pneg %p150
        %s240 = sand.u32 %s140, 1
        %s241 = scalar_lea.sflag [#allocation4], %s240
        %s242 = sand.u32 %s140, 1
        %s243 = smul.addr %s242, 128
        %s244 = scalar_lea.vmem [#allocation5], %s243
        %v245 = vld [vmem:[%s217] sm:$0xff]
        %v246 = vld [vmem:[%s217 + $0x8] sm:$0xff]
        %v247 = vld [vmem:[%s217 + $0x10] sm:$0xff]
        %v248 = vld [vmem:[%s217 + $0x18] sm:$0xff]
        %v249 = vld [vmem:[%s217 + $0x20] sm:$0xff]
        %v250 = vld [vmem:[%s217 + $0x28] sm:$0xff]
        %v251 = vld [vmem:[%s217 + $0x30] sm:$0xff]
        %v252 = vld [vmem:[%s217 + $0x38] sm:$0xff]
        %v253 = vld [vmem:[%s217 + $0x40] sm:$0xff]
        %v254 = vld [vmem:[%s217 + $0x48] sm:$0xff]
        %v255 = vld [vmem:[%s217 + $0x50] sm:$0xff]
        %v256 = vld [vmem:[%s217 + $0x58] sm:$0xff]
        %v257 = vld [vmem:[%s217 + $0x60] sm:$0xff]
        %v258 = vld [vmem:[%s217 + $0x68] sm:$0xff]
        %v259 = vld [vmem:[%s217 + $0x70] sm:$0xff]
        %v260 = vld [vmem:[%s217 + $0x78] sm:$0xff]
        %v261 = vadd.f32 %v245, %v246
        %262 = vadd.xlane.f32.xlu0 %v261
        %v263 = vpop.xlane.xlu0 %262
        %v264 = vadd.f32 %v247, %v248
        %265 = vadd.xlane.f32.xlu0 %v264
        %v266 = vpop.xlane.xlu0 %265
        %v267 = vadd.f32 %v249, %v250
        %268 = vadd.xlane.f32.xlu0 %v267
        %v269 = vpop.xlane.xlu0 %268
        %v270 = vadd.f32 %v251, %v252
        %271 = vadd.xlane.f32.xlu0 %v270
        %v272 = vpop.xlane.xlu0 %271
        %v273 = vadd.f32 %v253, %v254
        %274 = vadd.xlane.f32.xlu0 %v273
        %v275 = vpop.xlane.xlu0 %274
        %v276 = vadd.f32 %v255, %v256
        %277 = vadd.xlane.f32.xlu0 %v276
        %v278 = vpop.xlane.xlu0 %277
        %v279 = vadd.f32 %v257, %v258
        %280 = vadd.xlane.f32.xlu0 %v279
        %v281 = vpop.xlane.xlu0 %280
        %v282 = vadd.f32 %v259, %v260
        %283 = vadd.xlane.f32.xlu0 %v282
        %v284 = vpop.xlane.xlu0 %283
        %v285 = vmul.f32 %v263, 0.00390625
        %v286 = vmul.f32 %v266, 0.00390625
        %v287 = vmul.f32 %v269, 0.00390625
        %v288 = vmul.f32 %v272, 0.00390625
        %v289 = vmul.f32 %v275, 0.00390625
        %v290 = vmul.f32 %v278, 0.00390625
        %v291 = vmul.f32 %v281, 0.00390625
        %v292 = vmul.f32 %v284, 0.00390625
        %v293 = vld [vmem:[%s1] sm:$0xff]
        %v294 = vld [vmem:[%s1 + $0x8] sm:$0xff]
        %v295 = vld [vmem:[%s1 + $0x10] sm:$0xff]
        %v296 = vld [vmem:[%s1 + $0x18] sm:$0xff]
        %v297 = vld [vmem:[%s1 + $0x20] sm:$0xff]
        %v298 = vld [vmem:[%s1 + $0x28] sm:$0xff]
        %v299 = vld [vmem:[%s1 + $0x30] sm:$0xff]
        %v300 = vld [vmem:[%s1 + $0x38] sm:$0xff]
        %v301 = vld [vmem:[%s2] sm:$0x1]
        %v310 = vlaneseq
        %v311 = vand.u32 %v310, 127
        %v312 = vperm.slane %v285, %v311
        %v313 = vadd.s32 %v311, 4294967288
        %v314 = vperm.slane %v286, %v313
        %vm315 = vcmask 130112
        %v316 = vsel %vm315, %v314, %v312
        %v317 = vadd.s32 %v311, 4294967280
        %v318 = vperm.slane %v287, %v317
        %vm319 = vcmask 195712
        %v320 = vsel %vm319, %v318, %v316
        %v321 = vadd.s32 %v311, 4294967272
        %v322 = vperm.slane %v288, %v321
        %vm323 = vcmask 261312
        %v324 = vsel %vm323, %v322, %v320
        %v325 = vadd.s32 %v311, 4294967264
        %v326 = vperm.slane %v289, %v325
        %vm327 = vcmask 326912
        %v328 = vsel %vm327, %v326, %v324
        %v329 = vadd.s32 %v311, 4294967256
        %v330 = vperm.slane %v290, %v329
        %vm331 = vcmask 392512
        %v332 = vsel %vm331, %v330, %v328
        %v333 = vadd.s32 %v311, 4294967248
        %v334 = vperm.slane %v291, %v333
        %vm335 = vcmask 458112
        %v336 = vsel %vm335, %v334, %v332
        %v337 = vadd.s32 %v311, 4294967240
        %v338 = vperm.slane %v292, %v337
        %vm339 = vcmask 523712
        %v340 = vsel %vm339, %v338, %v336
        %vm341 = vcmask 523264
        %v342 = vsel %vm341, %v340, 0
        %344 = vmatpush.msra.mxu0 0.0
        %345 = vmatpush.msra.mxu0 0.0
        %346 = vmatpush.msra.mxu0 0.0
        %347 = vmatpush.msra.mxu0 0.0
        %348 = vmatpush.msra.mxu0 0.0
        %349 = vmatpush.msra.mxu0 0.0
        %350 = vmatpush.msra.mxu0 0.0
        %351 = vmatpush.msra.mxu0 0.0
        %352 = vmatpush.msra.mxu0 %v300
        %353 = vmatpush.msra.mxu0 %v299
        %354 = vmatpush.msra.mxu0 %v298
        %355 = vmatpush.msra.mxu0 %v297
        %356 = vmatpush.msra.mxu0 %v296
        %357 = vmatpush.msra.mxu0 %v295
        %358 = vmatpush.msra.mxu0 %v294
        %359 = vmatpush.msra.mxu0 %v293
        %360 = vmatmul.f32.gmra.mxu0 %v342
        %v361 = vpop.f32.mrf.mxu0
        %v362 = vadd.f32 %v301, %v361
        %363 = vdwg.mxu0
        %v364 = vmax.f32 %v362, 0.0
        %v365 = vld [vmem:[%s3] sm:$0xff]
        %v366 = vld [vmem:[%s3 + $0x8] sm:$0xff]
        %v367 = vld [vmem:[%s3 + $0x10] sm:$0xff]
        %v368 = vld [vmem:[%s3 + $0x18] sm:$0xff]
        %v369 = vld [vmem:[%s4] sm:$0x1]
        %vm370 = vcmask 261120
        %v372 = vsel %vm370, %v364, 0
        %374 = vmatpush.msra.mxu0 0.0
        %375 = vmatpush.msra.mxu0 0.0
        %376 = vmatpush.msra.mxu0 0.0
        %377 = vmatpush.msra.mxu0 0.0
        %378 = vmatpush.msra.mxu0 0.0
        %379 = vmatpush.msra.mxu0 0.0
        %380 = vmatpush.msra.mxu0 0.0
        %381 = vmatpush.msra.mxu0 0.0
        %382 = vmatpush.msra.mxu0 0.0
        %383 = vmatpush.msra.mxu0 0.0
        %384 = vmatpush.msra.mxu0 0.0
        %385 = vmatpush.msra.mxu0 0.0
        %386 = vmatpush.msra.mxu0 %v368
        %387 = vmatpush.msra.mxu0 %v367
        %388 = vmatpush.msra.mxu0 %v366
        %389 = vmatpush.msra.mxu0 %v365
        %390 = vmatmul.f32.gmra.mxu0 %v372
        %v391 = vpop.f32.mrf.mxu0
        %v392 = vadd.f32 %v369, %v391
        %393 = vdwg.mxu0
        %v394 = vxor.u32 %v392, 2147483648
        %v395 = vmul.f32 %v394, 1.442695
        %v396 = vpow.pop %v395
        %v397 = vadd.f32 %v396, 1.0
        %v398 = vrcp.pop %v397
        %v399 = vmul.f32 %v397, %v398
        %v400 = vsub.f32 1.0, %v399
        %v401 = vmul.f32 %v398, %v400
        %v402 = vadd.f32 %v398, %v401
        %vm403 = vweird.f32 %v397
        %vm404 = vweird.f32 %v398
        %vm405 = vmor %vm403, %vm404
        %v406 = vsel %vm405, %v398, %v402
        %v407 = vand.u32 2147483647, %v397
        %vm408 = vcmp.eq.f32.partialorder %v407, 8.507059e+37
        %v409 = vand.u32 %v397, 2147483648
        %v410 = vor.u32 1.1754944e-38, %v409
        %v411 = vsel %vm408, %v410, %v406
        %v412 = vmul.f32 1.0, %v411
        %v413 = vperm.slane %v412, 0
        %v414 = vlaneseq
        %v415 = vshrl.u32 %v414, 7
        %417 = vset.pattern.permute.xlu0 %v415
        %418 = vperm.xlu0 %417, %v413
        %v419 = vpop.permute.xlu0 %418
        %v420 = vlaneseq
        %v421 = vshrl.u32 %v420, 7
        %v422 = vadd.s32 %v421, 8
        %423 = vset.pattern.permute.xlu0 %v422
        %424 = vperm.xlu0 %423, %v413
        %v425 = vpop.permute.xlu0 %424
        %v426 = vlaneseq
        %v427 = vshrl.u32 %v426, 7
        %v428 = vadd.s32 %v427, 16
        %429 = vset.pattern.permute.xlu0 %v428
        %430 = vperm.xlu0 %429, %v413
        %v431 = vpop.permute.xlu0 %430
        %v432 = vlaneseq
        %v433 = vshrl.u32 %v432, 7
        %v434 = vadd.s32 %v433, 24
        %435 = vset.pattern.permute.xlu0 %v434
        %436 = vperm.xlu0 %435, %v413
        %v437 = vpop.permute.xlu0 %436
        %v438 = vlaneseq
        %v439 = vshrl.u32 %v438, 7
        %v440 = vadd.s32 %v439, 32
        %441 = vset.pattern.permute.xlu0 %v440
        %442 = vperm.xlu0 %441, %v413
        %v443 = vpop.permute.xlu0 %442
        %v444 = vlaneseq
        %v445 = vshrl.u32 %v444, 7
        %v446 = vadd.s32 %v445, 40
        %447 = vset.pattern.permute.xlu0 %v446
        %448 = vperm.xlu0 %447, %v413
        %v449 = vpop.permute.xlu0 %448
        %v450 = vlaneseq
        %v451 = vshrl.u32 %v450, 7
        %v452 = vadd.s32 %v451, 48
        %453 = vset.pattern.permute.xlu0 %v452
        %454 = vperm.xlu0 %453, %v413
        %v455 = vpop.permute.xlu0 %454
        %v456 = vlaneseq
        %v457 = vshrl.u32 %v456, 7
        %v458 = vadd.s32 %v457, 56
        %459 = vset.pattern.permute.xlu0 %v458
        %460 = vperm.xlu0 %459, %v413
        %v461 = vpop.permute.xlu0 %460
        %v462 = vmul.f32 %v245, %v419
        %v463 = vmul.f32 %v246, %v419
        %v464 = vmul.f32 %v247, %v425
        %v465 = vmul.f32 %v248, %v425
        %v466 = vmul.f32 %v249, %v431
        %v467 = vmul.f32 %v250, %v431
        %v468 = vmul.f32 %v251, %v437
        %v469 = vmul.f32 %v252, %v437
        %v470 = vmul.f32 %v253, %v443
        %v471 = vmul.f32 %v254, %v443
        %v472 = vmul.f32 %v255, %v449
        %v473 = vmul.f32 %v256, %v449
        %v474 = vmul.f32 %v257, %v455
        %v475 = vmul.f32 %v258, %v455
        %v476 = vmul.f32 %v259, %v461
        %v477 = vmul.f32 %v260, %v461
        %478 = vst [vmem:[%s244] sm:$0xff] %v462
        %479 = vst [vmem:[%s244 + $0x8] sm:$0xff] %v463
        %480 = vst [vmem:[%s244 + $0x10] sm:$0xff] %v464
        %481 = vst [vmem:[%s244 + $0x18] sm:$0xff] %v465
        %482 = vst [vmem:[%s244 + $0x20] sm:$0xff] %v466
        %483 = vst [vmem:[%s244 + $0x28] sm:$0xff] %v467
        %484 = vst [vmem:[%s244 + $0x30] sm:$0xff] %v468
        %485 = vst [vmem:[%s244 + $0x38] sm:$0xff] %v469
        %486 = vst [vmem:[%s244 + $0x40] sm:$0xff] %v470
        %487 = vst [vmem:[%s244 + $0x48] sm:$0xff] %v471
        %488 = vst [vmem:[%s244 + $0x50] sm:$0xff] %v472
        %489 = vst [vmem:[%s244 + $0x58] sm:$0xff] %v473
        %490 = vst [vmem:[%s244 + $0x60] sm:$0xff] %v474
        %491 = vst [vmem:[%s244 + $0x68] sm:$0xff] %v475
        %492 = vst [vmem:[%s244 + $0x70] sm:$0xff] %v476
        %493 = vst [vmem:[%s244 + $0x78] sm:$0xff] %v477
        %s494 = sand.u32 %s140, 1
        %s495 = scalar_lea.sflag [#allocation4], %s494
        %s496 = sand.u32 %s140, 1
        %s497 = smul.addr %s496, 128
        %s498 = scalar_lea.vmem [#allocation5], %s497
        // Predicated region
        $region45: #{tpu_custom_call.1} parent=39 // pred_check
          %p499 = pneg %p150
        $region46: #{tpu_custom_call.1} parent=39 // pred_check_branch
          %501 = sbr.rel (%p499) target = $region48
        $region47: #{tpu_custom_call.1} parent=39 // pred_region
          %503 = vsyncadd %s495, 0
          %s504 = smul.addr %s22, 16
          %s505 = smul.addr %s504, 8
          %s506 = scalar_lea.hbm %s5, %s505
          %s507 = sshll.u32 %s498, 4
          %s508 = int_to_ptr.vmem [resolvable:$true] %s507
          %s509 = sshll.u32 %s506, 4
          %s510 = int_to_ptr.hbm [resolvable:$true] %s509
          %515 = dma.vmem_to_hbm [thread:$0]  %s508, 2048, %s510, %s495, 256, 256, 16
        $region48: #{tpu_custom_call.1} parent=39 // pred_fallthru
          _
      $region40: #{tpu_custom_call.1} parent=5 // pred_fallthru
        _
      %p516 = scmp.le.s32.totalorder 2, %s17
      // Predicated region
      $region49: #{tpu_custom_call.1} parent=5 // pred_check
        %p517 = pneg %p516
      $region50: #{tpu_custom_call.1} parent=5 // pred_check_branch
        %519 = sbr.rel (%p517) target = $region52
      $region51: #{tpu_custom_call.1} parent=5 // pred_region
        %s520 = ssub.s32 %s17, 2
        // Predicated region
        $region53: #{tpu_custom_call.1} parent=51 // pred_check
          %p521 = pneg %p156
        $region54: #{tpu_custom_call.1} parent=51 // pred_check_branch
          %523 = sbr.rel (%p521) target = $region56
        $region55: #{tpu_custom_call.1} parent=51 // pred_region
          %s524 = sand.u32 %s141, 1
          %s525 = scalar_lea.sflag [#allocation4], %s524
          %s526 = sand.u32 %s141, 1
          %s527 = smul.addr %s526, 128
          %s528 = scalar_lea.vmem [#allocation5], %s527
          %530 = dma.done %s525, 2048
        $region56: #{tpu_custom_call.1} parent=51 // pred_fallthru
          _
      $region52: #{tpu_custom_call.1} parent=5 // pred_fallthru
        _
    $region6: #{tpu_custom_call.1} parent=1 // loop_footer
      %s21 = sadd.s32 1, %s17
    $region7: #{tpu_custom_call.1} parent=1 // loop_footer_branch
      %16 = sbr.rel target = $region3
    $region8: #{tpu_custom_call.1} parent=1 // loop_exit
      _
    %531 = vsyncpa [#allocation3], 1
    %s532 = scalar_lea.sflag [#allocation3], 1
    %533 = vsyncpa %s532, 1
    %534 = vsyncpa [#allocation4], 1
    %s535 = scalar_lea.sflag [#allocation4], 1
    %536 = vsyncpa %s535, 1

</llo_original>
